<compile_context>
chip_gen: v5e
topology: v5e:2x2
jax: 0.10.0
libtpu: 0.0.40
codegen_flags: <defaults>
</compile_context>

<pallas_src>
import functools

import jax
import jax.numpy as jnp
from jax import lax
from jax.experimental import pallas as pl
from jax.experimental.pallas import tpu as pltpu


def _round_up(x, m):
    return (x + m - 1) // m * m


# Sublane packing multiple per element size (f32 -> 8, bf16 -> 16, int8 -> 32).
_SUBLANE_PACK = {4: 8, 2: 16, 1: 32}


def _self_seq_atten_kernel(h_ref, mask_ref, o_ref, *, use_bf16_matmul):
    # h_ref:    (TB, Lp, Dp)   TB batch elements, padded seq/feature dims
    # mask_ref: (TB, 1, Lp)    int32 key-validity mask (0 == padded key)
    # o_ref:    (TB, Lp, Dp)
    h = h_ref[...]
    m = mask_ref[...]

    if use_bf16_matmul and h.dtype == jnp.float32:
        # bf16-native MXU path (gated; ~1e-3 rel error), f32 accumulation.
        h_mm = h.astype(jnp.bfloat16)
        mm_precision = None
    else:
        h_mm = h
        mm_precision = (
            lax.Precision.HIGHEST if h.dtype == jnp.float32 else None
        )

    # scores[b, l, k] = sum_d h[b, l, d] * h[b, k, d]
    # Batched NT contraction on the MXU; no explicit transpose materialized.
    s = lax.dot_general(
        h_mm, h_mm,
        dimension_numbers=(((2,), (2,)), ((0,), (0,))),
        precision=mm_precision,
        preferred_element_type=jnp.float32,
    )                                               # (TB, Lp, Lp) f32

    lp = s.shape[-1]
    row = lax.broadcasted_iota(jnp.int32, (lp, lp), 0)
    col = lax.broadcasted_iota(jnp.int32, (lp, lp), 1)
    diag = (row == col)[None, :, :]                 # (1, Lp, Lp)
    key_pad = (m == 0)                              # (TB, 1, Lp) -> bcast over queries

    # masked_fill_(eye, 0.0) then masked_fill_(h_mask.eq(0), -inf): key mask wins.
    s = jnp.where(key_pad, -jnp.inf, jnp.where(diag, jnp.float32(0.0), s))

    # Softmax over the key dimension (PyTorch dim=2), normalization deferred.
    s_max = jnp.max(s, axis=-1, keepdims=True)
    p = jnp.exp(s - s_max)                          # unnormalized probs, <= 1
    denom = jnp.sum(p, axis=-1, keepdims=True)      # (TB, Lp, 1)

    # o[b, l, d] = (sum_k p[b, l, k] * h[b, k, d]) / denom[b, l]
    o = lax.dot_general(
        p.astype(h_mm.dtype), h_mm,
        dimension_numbers=(((2,), (1,)), ((0,), (0,))),
        precision=mm_precision,
        preferred_element_type=jnp.float32,
    )                                               # (TB, Lp, Dp) f32
    # Exact reciprocal on the tiny (TB, Lp, 1) denominator (the approx/bf16
    # reciprocal previously exceeded the accuracy budget), then a broadcast
    # multiply over Dp -- cheaper than normalizing the Lp*Lp prob matrix.
    o_ref[...] = (o * (jnp.float32(1.0) / denom)).astype(o_ref.dtype)


def _vmem_capacity_bytes():
    """Physical VMEM of the local generation, with a conservative fallback."""
    try:
        return int(pltpu.get_tpu_info().vmem_capacity_bytes)
    except Exception:
        return 64 * 1024 * 1024  # v7x-sized fallback; safe everywhere


def _per_block_bytes(tb, c_len_p, d_p, itemsize):
    """Bytes per grid step.  Single source of truth for picker + vmem limit."""
    per_elem = (
        4 * c_len_p * d_p * itemsize      # h + o blocks, double-buffered
        + 2 * c_len_p * 4                 # mask block, double-buffered
        + 3 * c_len_p * c_len_p * 4       # f32 score / prob temps (+ slack)
        + c_len_p * d_p * 4               # f32 output temp before final cast
    )
    return tb * per_elem


def _pick_block_batch(batch, c_len_p, d_p, itemsize, budget):
    """Largest per-step batch tile that fits the VMEM budget (no hard cap)."""
    per_elem = _per_block_bytes(1, c_len_p, d_p, itemsize)
    tb = max(1, int(budget // per_elem))
    # Keep enough sequential grid steps for DMA/compute overlap; >=4 steps for
    # larger batches so both v7x TensorCores get >=2 steps each.
    if batch >= 8:
        min_steps = 4
    elif batch >= 2:
        min_steps = 2
    else:
        min_steps = 1
    tb = min(tb, max(1, batch // min_steps), batch)
    return int(tb)


def self_seq_atten_batch_major(hb, h_mask, *, use_bf16_matmul=False):
    """
    hb:     (batch, c_len, input_size)   batch-major activations
    h_mask: (batch, c_len)               nonzero == valid key
    returns (batch, c_len, input_size)
    """
    batch, c_len, d = hb.shape
    itemsize = hb.dtype.itemsize
    pack = _SUBLANE_PACK.get(itemsize, 8)
    c_len_p = _round_up(c_len, pack)
    d_p = _round_up(max(d, 1), 128)     # lane-dense loads/stores, MXU-friendly K

    cap = _vmem_capacity_bytes()
    budget = int(cap * 0.45)            # per-block budget (double-buffering counted)
    tb = _pick_block_batch(batch, c_len_p, d_p, itemsize, budget)
    batch_p = _round_up(batch, tb)

    # Zero-pad features / seq; zero features do not change the NT scores.
    hp = jnp.pad(hb, ((0, batch_p - batch), (0, c_len_p - c_len), (0, d_p - d)))

    # Keep the mask as int32 (compare-before-cast safety for non-0/1 masks).
    mask_i = (h_mask != 0).astype(jnp.int32)
    mask_i = jnp.pad(mask_i, ((0, 0), (0, c_len_p - c_len)), constant_values=0)
    # Padded batch rows get all-ones masks so they stay finite (then sliced off).
    mask_i = jnp.pad(mask_i, ((0, batch_p - batch), (0, 0)), constant_values=1)
    mask_i = mask_i.reshape(batch_p, 1, c_len_p)

    # VMEM limit derived from the same per-block formula as the picker.
    est = _per_block_bytes(tb, c_len_p, d_p, itemsize)
    vmem_limit = int(min(int(cap * 0.9), max(32 * 1024 * 1024, 2 * est)))

    kernel = functools.partial(
        _self_seq_atten_kernel, use_bf16_matmul=use_bf16_matmul)

    out = pl.pallas_call(
        kernel,
        out_shape=jax.ShapeDtypeStruct((batch_p, c_len_p, d_p), hb.dtype),
        grid_spec=pltpu.PrefetchScalarGridSpec(
            num_scalar_prefetch=0,
            grid=(batch_p // tb,),
            in_specs=[
                pl.BlockSpec((tb, c_len_p, d_p), lambda b: (b, 0, 0)),
                pl.BlockSpec((tb, 1, c_len_p), lambda b: (b, 0, 0)),
            ],
            out_specs=pl.BlockSpec((tb, c_len_p, d_p), lambda b: (b, 0, 0)),
        ),
        compiler_params=pltpu.CompilerParams(
            dimension_semantics=("parallel",),
            vmem_limit_bytes=vmem_limit,
        ),
    )(hp, mask_i)

    return out[:batch, :c_len, :d]


def self_seq_atten(h, h_mask, *, use_bf16_matmul=False):
    """
    PyTorch-layout wrapper.
    h:      (c_len, batch, input_size)
    h_mask: (batch, c_len)
    returns (c_len, batch, input_size)

    The two transposes are pure glue (each is a full HBM pass); callers that
    already hold batch-major activations should call
    self_seq_atten_batch_major directly and skip them.
    """
    hb = jnp.transpose(h, (1, 0, 2))                              # (batch, c_len, D)
    ob = self_seq_atten_batch_major(hb, h_mask,
                                    use_bf16_matmul=use_bf16_matmul)
    return jnp.transpose(ob, (1, 0, 2))


def _reference(h, h_mask):
    # Pure-JAX reference reproducing the PyTorch forward exactly.
    c_len = h.shape[0]
    hb = jnp.transpose(h, (1, 0, 2))                                 # (B, L, D)
    alpha = jnp.einsum('bld,bmd->blm', hb, hb,
                       precision=lax.Precision.HIGHEST)              # (B, L, L)
    eye = jnp.eye(c_len, dtype=bool)[None]
    alpha = jnp.where(eye, 0.0, alpha)
    key_pad = (h_mask == 0)[:, None, :]
    alpha = jnp.where(key_pad, -jnp.inf, alpha)
    alpha = jax.nn.softmax(alpha, axis=2)
    o = jnp.einsum('blm,bmd->bld', alpha, hb,
                   precision=lax.Precision.HIGHEST)
    return jnp.transpose(o, (1, 0, 2))


if __name__ == "__main__":
    key = jax.random.PRNGKey(0)

    # Case 1: the module's nominal small shape.
    c_len, batch, input_size = 8, 2, 32
    k1, k2 = jax.random.split(key)
    h = jax.random.normal(k1, (c_len, batch, input_size), dtype=jnp.float32)
    h_mask = jnp.array(
        [[1] * c_len,
         [1] * (c_len - 3) + [0] * 3],
        dtype=jnp.float32)

    out = self_seq_atten(h, h_mask)
    jax.block_until_ready(out)
    ref = _reference(h, h_mask)
    assert out.shape == (c_len, batch, input_size)
    assert jnp.allclose(out, ref, atol=2e-3, rtol=2e-3), "mismatch vs reference (case 1)"

    # Case 2: awkward sizes to exercise the padding path (c_len, d not aligned).
    c_len2, batch2, d2 = 12, 3, 40
    h2 = jax.random.normal(k2, (c_len2, batch2, d2), dtype=jnp.float32)
    lens = jnp.array([12, 7, 10])
    h_mask2 = (jnp.arange(c_len2)[None, :] < lens[:, None]).astype(jnp.float32)

    out2 = self_seq_atten(h2, h_mask2)
    jax.block_until_ready(out2)
    ref2 = _reference(h2, h_mask2)
    assert out2.shape == (c_len2, batch2, d2)
    assert jnp.allclose(out2, ref2, atol=2e-3, rtol=2e-3), "mismatch vs reference (case 2)"

    print("KERNEL_OK")
</pallas_src>

<mosaic_0001>
module attributes {stable_mosaic.version = 11 : i64} {
  func.func @_self_seq_atten_kernel(%arg0: i32, %arg1: memref<1x8x128xf32, #tpu.memory_space<vmem>>, %arg2: memref<1x1x8xi32, #tpu.memory_space<vmem>>, %arg3: memref<1x8x128xf32, #tpu.memory_space<vmem>>) attributes {dimension_semantics = [#tpu.dimension_semantics<parallel>], iteration_bounds = array<i64: 2>, scalar_prefetch = 0 : i64, scratch_operands = 0 : i64, tpu.core_type = #tpu.core_type<tc>, window_params = [{transform_indices = @transform_0, window_bounds = array<i64: 1, 8, 128>}, {transform_indices = @transform_1, window_bounds = array<i64: 1, 1, 8>}, {transform_indices = @transform_2, window_bounds = array<i64: 1, 8, 128>}]} {
    %c0 = arith.constant 0 : index
    %c0_0 = arith.constant 0 : index
    %c0_1 = arith.constant 0 : index
    %0 = vector.load %arg1[%c0, %c0_0, %c0_1] : memref<1x8x128xf32, #tpu.memory_space<vmem>>, vector<1x8x128xf32>
    %c0_2 = arith.constant 0 : index
    %c0_3 = arith.constant 0 : index
    %c0_4 = arith.constant 0 : index
    %1 = vector.load %arg2[%c0_2, %c0_3, %c0_4] : memref<1x1x8xi32, #tpu.memory_space<vmem>>, vector<1x1x8xi32>
    %cst = arith.constant dense<0.000000e+00> : vector<1x8x8xf32>
    %2 = tpu.matmul %0, %0, %cst {dimension_numbers = #tpu.dot_dimension_numbers<[2], [2], [1], [1], [0, 0, 0, 1, 1, 1], [0], [0]>, precision = #tpu.contract_precision<fp32>} : vector<1x8x128xf32>, vector<1x8x128xf32>, vector<1x8x8xf32> -> vector<1x8x8xf32>
    %3 = tpu.iota {dimensions = array<i32: 0>} : vector<8x8xi32>
    %4 = tpu.iota {dimensions = array<i32: 1>} : vector<8x8xi32>
    %5 = arith.cmpi eq, %3, %4 : vector<8x8xi32>
    %6 = vector.shape_cast %5 : vector<8x8xi1> to vector<1x8x8xi1>
    %c0_i32 = arith.constant 0 : i32
    %7 = vector.broadcast %c0_i32 : i32 to vector<1x1x8xi32>
    %8 = arith.cmpi eq, %1, %7 : vector<1x1x8xi32>
    %cst_5 = arith.constant 0.000000e+00 : f32
    %9 = vector.broadcast %cst_5 : f32 to vector<1x8x8xf32>
    %10 = arith.select %6, %9, %2 : vector<1x8x8xi1>, vector<1x8x8xf32>
    %cst_6 = arith.constant 0xFF800000 : f32
    %11 = vector.shape_cast %8 : vector<1x1x8xi1> to vector<1x1x8xi1>
    %12 = vector.broadcast %11 : vector<1x1x8xi1> to vector<1x8x8xi1>
    %13 = vector.broadcast %cst_6 : f32 to vector<1x8x8xf32>
    %14 = arith.select %12, %13, %10 : vector<1x8x8xi1>, vector<1x8x8xf32>
    %cst_7 = arith.constant dense<0xFF800000> : vector<1x8xf32>
    %15 = vector.multi_reduction <maximumf>, %14, %cst_7 [2] : vector<1x8x8xf32> to vector<1x8xf32>
    %16 = vector.shape_cast %15 : vector<1x8xf32> to vector<1x8x1xf32>
    %17 = vector.broadcast %16 : vector<1x8x1xf32> to vector<1x8x8xf32>
    %18 = arith.subf %14, %17 : vector<1x8x8xf32>
    %19 = math.exp %18 : vector<1x8x8xf32>
    %cst_8 = arith.constant dense<0.000000e+00> : vector<1x8xf32>
    %20 = vector.multi_reduction <add>, %19, %cst_8 [2] : vector<1x8x8xf32> to vector<1x8xf32>
    %21 = vector.shape_cast %20 : vector<1x8xf32> to vector<1x8x1xf32>
    %cst_9 = arith.constant dense<0.000000e+00> : vector<1x8x128xf32>
    %22 = tpu.matmul %19, %0, %cst_9 {dimension_numbers = #tpu.dot_dimension_numbers<[2], [1], [1], [2], [0, 0, 0, 1, 1, 2], [0], [0]>, precision = #tpu.contract_precision<fp32>} : vector<1x8x8xf32>, vector<1x8x128xf32>, vector<1x8x128xf32> -> vector<1x8x128xf32>
    %cst_10 = arith.constant 1.000000e+00 : f32
    %23 = vector.broadcast %cst_10 : f32 to vector<1x8x1xf32>
    %24 = arith.divf %23, %21 : vector<1x8x1xf32>
    %25 = vector.broadcast %24 : vector<1x8x1xf32> to vector<1x8x128xf32>
    %26 = arith.mulf %22, %25 : vector<1x8x128xf32>
    %c0_11 = arith.constant 0 : index
    %c0_12 = arith.constant 0 : index
    %c0_13 = arith.constant 0 : index
    %27 = vector.load %arg3[%c0_11, %c0_12, %c0_13] : memref<1x8x128xf32, #tpu.memory_space<vmem>>, vector<1x8x128xf32>
    tpu.vector_store %arg3[%c0_11, %c0_12, %c0_13], %26 {strides = array<i32>} : memref<1x8x128xf32, #tpu.memory_space<vmem>>, vector<1x8x128xf32>,
    return
  }
  func.func @transform_0(%arg0: i32) -> (i32, i32, i32) {
    %c0_i32 = arith.constant 0 : i32
    %c0_i32_0 = arith.constant 0 : i32
    %c0_i32_1 = arith.constant 0 : i32
    return %arg0, %c0_i32, %c0_i32_0 : i32, i32, i32
  }
  func.func @transform_1(%arg0: i32) -> (i32, i32, i32) {
    %c0_i32 = arith.constant 0 : i32
    %c0_i32_0 = arith.constant 0 : i32
    %c0_i32_1 = arith.constant 0 : i32
    return %arg0, %c0_i32, %c0_i32_0 : i32, i32, i32
  }
  func.func @transform_2(%arg0: i32) -> (i32, i32, i32) {
    %c0_i32 = arith.constant 0 : i32
    %c0_i32_0 = arith.constant 0 : i32
    %c0_i32_1 = arith.constant 0 : i32
    return %arg0, %c0_i32, %c0_i32_0 : i32, i32, i32
  }
}

</mosaic_0001>

<llo_original>
// kernel: tpu_custom_call.1
$region0: #{tpu_custom_call.1}
  #allocation0 [shape = 'u32[]', space=smem, size = 0x4, offset = 0x4, fixed_abs, tag = 'smem constant byte address 0x4 - core index']
  #allocation1 [shape = 'u32[72,128]{1,0:T(1,128)}', space=vmem, size = 0x9000, scoped, tag = 'internal scratch']
  %s0 = inlined_call_operand.hbm [shape: f32[2,8,128], index: 0, kind: input, shape index: {}]
  %s1 = inlined_call_operand.hbm [shape: s32[2,1,8], index: 1, kind: input, shape index: {}]
  %s2 = inlined_call_operand.hbm [shape: f32[2,8,128], index: 2, kind: output, shape index: {}]
  %s3 = sld [smem:[#allocation0]]
  $region49: #{tpu_custom_call.1} parent=0
    _
  %s5 = ssub.s32 1, %s3
  %s6 = scalar_select 0, %s5, %s3
  $region1: #{tpu_custom_call.1} parent=0
    #allocation2 [shape = 'u8[8192]{0}', space=vmem, size = 0x2000, scoped, tag = 'input window, operand 0']
    #allocation3 [shape = 's32[2]{0}', space=sflag, size = 0x8, scoped, tag = 'scoped memory for tpu_custom_call.1']
    #allocation4 [shape = 's32[2]{0}', space=sflag, size = 0x8, scoped, tag = 'scoped memory for tpu_custom_call.1']
    #allocation5 [shape = 'u8[1024]{0}', space=vmem, size = 0x400, scoped, tag = 'input window, operand 1']
    #allocation6 [shape = 's32[2]{0}', space=sflag, size = 0x8, scoped, tag = 'scoped memory for tpu_custom_call.1']
    #allocation7 [shape = 'u8[8192]{0}', space=vmem, size = 0x2000, scoped, tag = 'output window, operand 0']
    %7 = vsyncpa [#allocation3], 0
    %s8 = scalar_lea.sflag [#allocation3], 1
    %9 = vsyncpa %s8, 0
    %10 = vsyncpa [#allocation6], 0
    %s11 = scalar_lea.sflag [#allocation6], 1
    %12 = vsyncpa %s11, 0
    %13 = vsyncpa [#allocation4], 0
    %s14 = scalar_lea.sflag [#allocation4], 1
    %15 = vsyncpa %s14, 0
    loop: start=0, step=1, limit=4
    $region2: #{tpu_custom_call.1} parent=1 // loop_pre_header
      _
    $region3: #{tpu_custom_call.1} parent=1 // loop_header
      %s17 = sphi 0, %s21
      %p18 = scmp.ge.s32.totalorder %s17, 4
      %s27 = sphi 0, %s29
      %s30 = sphi 0, %s27
      %s31 = sphi 0, %s30
      %s47 = sphi 0, %s31
      %s53 = sphi 0, %s55
      %s56 = sphi 0, %s53
      %s57 = sphi 0, %s56
      %s73 = sphi 0, %s57
      %s79 = sphi 0, %s81
      %s82 = sphi 0, %s79
      %s83 = sphi 0, %s82
      %s99 = sphi 0, %s83
    $region4: #{tpu_custom_call.1} parent=1 // loop_header_branch
      %20 = sbr.rel (%p18) target = $region8
    $region5: #{tpu_custom_call.1} parent=1 // loop_body
      %s22 = ssub.s32 %s17, 1
      %s23 = ssub.s32 %s17, 2
      %s24 = sadd.s32 %s17, 1
      %s25 = ssub.s32 %s17, %s24
      %p26 = scmp.eq.s32.totalorder %s25, 0
      %s28 = sadd.s32 %s27, 1
      %s29 = scalar_select %p26, %s27, %s28
      %p32 = pneg %p26
      %p33 = scmp.eq.s32.totalorder %s17, 1
      %p34 = por %p32, %p33
      %p35 = scmp.ne.s32.totalorder %s27, %s30
      %p36 = scmp.eq.s32.totalorder %s17, 0
      %p37 = por %p35, %p36
      %p38 = scmp.ne.s32.totalorder %s27, %s30
      %p39 = scmp.eq.s32.totalorder %s22, 1
      %p40 = por %p38, %p39
      %p41 = scmp.ne.s32.totalorder %s30, %s31
      %p42 = scmp.eq.s32.totalorder %s22, 0
      %p43 = por %p41, %p42
      %p44 = scmp.ne.s32.totalorder %s30, %s31
      %p45 = scmp.eq.s32.totalorder %s23, 1
      %p46 = por %p44, %p45
      %p48 = scmp.ne.s32.totalorder %s31, %s47
      %p49 = scmp.eq.s32.totalorder %s23, 0
      %p50 = por %p48, %p49
      %s51 = ssub.s32 %s17, %s24
      %p52 = scmp.eq.s32.totalorder %s51, 0
      %s54 = sadd.s32 %s53, 1
      %s55 = scalar_select %p52, %s53, %s54
      %p58 = pneg %p52
      %p59 = scmp.eq.s32.totalorder %s17, 1
      %p60 = por %p58, %p59
      %p61 = scmp.ne.s32.totalorder %s53, %s56
      %p62 = scmp.eq.s32.totalorder %s17, 0
      %p63 = por %p61, %p62
      %p64 = scmp.ne.s32.totalorder %s53, %s56
      %p65 = scmp.eq.s32.totalorder %s22, 1
      %p66 = por %p64, %p65
      %p67 = scmp.ne.s32.totalorder %s56, %s57
      %p68 = scmp.eq.s32.totalorder %s22, 0
      %p69 = por %p67, %p68
      %p70 = scmp.ne.s32.totalorder %s56, %s57
      %p71 = scmp.eq.s32.totalorder %s23, 1
      %p72 = por %p70, %p71
      %p74 = scmp.ne.s32.totalorder %s57, %s73
      %p75 = scmp.eq.s32.totalorder %s23, 0
      %p76 = por %p74, %p75
      %s77 = ssub.s32 %s17, %s24
      %p78 = scmp.eq.s32.totalorder %s77, 0
      %s80 = sadd.s32 %s79, 1
      %s81 = scalar_select %p78, %s79, %s80
      %p84 = pneg %p78
      %p85 = scmp.eq.s32.totalorder %s17, 1
      %p86 = por %p84, %p85
      %p87 = scmp.ne.s32.totalorder %s79, %s82
      %p88 = scmp.eq.s32.totalorder %s17, 0
      %p89 = por %p87, %p88
      %p90 = scmp.ne.s32.totalorder %s79, %s82
      %p91 = scmp.eq.s32.totalorder %s22, 1
      %p92 = por %p90, %p91
      %p93 = scmp.ne.s32.totalorder %s82, %s83
      %p94 = scmp.eq.s32.totalorder %s22, 0
      %p95 = por %p93, %p94
      %p96 = scmp.ne.s32.totalorder %s82, %s83
      %p97 = scmp.eq.s32.totalorder %s23, 1
      %p98 = por %p96, %p97
      %p100 = scmp.ne.s32.totalorder %s83, %s99
      %p101 = scmp.eq.s32.totalorder %s23, 0
      %p102 = por %p100, %p101
      %p103 = scmp.le.s32.totalorder 1, %s17
      %p104 = scmp.lt.s32.totalorder %s17, 3
      %p105 = pnand %p103, %p104
      %p106 = pneg %p105
      // Predicated region
      $region9: #{tpu_custom_call.1} parent=5 // pred_check
        _
      $region10: #{tpu_custom_call.1} parent=5 // pred_check_branch
        %108 = sbr.rel (%p105) target = $region12
      $region11: #{tpu_custom_call.1} parent=5 // pred_region
        %s109 = ssub.s32 %s17, 1
      $region12: #{tpu_custom_call.1} parent=5 // pred_fallthru
        _
      %p110 = scmp.lt.s32.totalorder %s17, 2
      // Predicated region
      $region13: #{tpu_custom_call.1} parent=5 // pred_check
        %p111 = pneg %p110
      $region14: #{tpu_custom_call.1} parent=5 // pred_check_branch
        %113 = sbr.rel (%p111) target = $region16
      $region15: #{tpu_custom_call.1} parent=5 // pred_region
        // Predicated region
        $region17: #{tpu_custom_call.1} parent=15 // pred_check
          %p114 = pneg %p37
        $region18: #{tpu_custom_call.1} parent=15 // pred_check_branch
          %116 = sbr.rel (%p114) target = $region20
        $region19: #{tpu_custom_call.1} parent=15 // pred_region
          %s117 = sand.u32 %s27, 1
          %s118 = scalar_lea.sflag [#allocation3], %s117
          %s119 = sand.u32 %s27, 1
          %s120 = smul.addr %s119, 8
          %s121 = scalar_lea.vmem [#allocation2], %s120
          %123 = vsyncadd %s118, 0
          %s124 = smul.addr %s17, 8
          %s125 = scalar_lea.hbm %s0, %s124
          %s127 = sshll.u32 %s125, 4
          %s128 = int_to_ptr.hbm [resolvable:$true] %s127
          %s129 = sshll.u32 %s121, 4
          %s130 = int_to_ptr.vmem [resolvable:$true] %s129
          %132 = dma.hbm_to_vmem [thread:$0]  %s128, 128, %s130, %s118
        $region20: #{tpu_custom_call.1} parent=15 // pred_fallthru
          _
        // Predicated region
        $region21: #{tpu_custom_call.1} parent=15 // pred_check
          %p133 = pneg %p63
        $region22: #{tpu_custom_call.1} parent=15 // pred_check_branch
          %135 = sbr.rel (%p133) target = $region24
        $region23: #{tpu_custom_call.1} parent=15 // pred_region
          %s136 = sand.u32 %s53, 1
          %s137 = scalar_lea.sflag [#allocation6], %s136
          %s138 = sand.u32 %s53, 1
          %s139 = scalar_lea.vmem [#allocation5], %s138
          %141 = vsyncadd %s137, 0
          %s142 = scalar_lea.hbm %s1, %s17
          %s144 = sshll.u32 %s142, 4
          %s145 = int_to_ptr.hbm [resolvable:$true] %s144
          %s146 = sshll.u32 %s139, 4
          %s147 = int_to_ptr.vmem [resolvable:$true] %s146
          %149 = dma.hbm_to_vmem [thread:$0]  %s145, 16, %s147, %s137
        $region24: #{tpu_custom_call.1} parent=15 // pred_fallthru
          _
      $region16: #{tpu_custom_call.1} parent=5 // pred_fallthru
        _
      %p150 = scmp.le.s32.totalorder 1, %s17
      %p151 = scmp.lt.s32.totalorder %s17, 3
      %p152 = pnand %p150, %p151
      %p153 = pneg %p152
      // Predicated region
      $region25: #{tpu_custom_call.1} parent=5 // pred_check
        _
      $region26: #{tpu_custom_call.1} parent=5 // pred_check_branch
        %155 = sbr.rel (%p152) target = $region28
      $region27: #{tpu_custom_call.1} parent=5 // pred_region
        %s156 = ssub.s32 %s17, 1
        %s157 = sand.u32 %s30, 1
        %s158 = scalar_lea.sflag [#allocation3], %s157
        %s159 = sand.u32 %s30, 1
        %s160 = smul.addr %s159, 8
        %s161 = scalar_lea.vmem [#allocation2], %s160
        // Predicated region
        $region29: #{tpu_custom_call.1} parent=27 // pred_check
          %p162 = pneg %p43
        $region30: #{tpu_custom_call.1} parent=27 // pred_check_branch
          %164 = sbr.rel (%p162) target = $region32
        $region31: #{tpu_custom_call.1} parent=27 // pred_region
          %166 = dma.done %s158, 128
        $region32: #{tpu_custom_call.1} parent=27 // pred_fallthru
          _
        %s167 = sand.u32 %s56, 1
        %s168 = scalar_lea.sflag [#allocation6], %s167
        %s169 = sand.u32 %s56, 1
        %s170 = scalar_lea.vmem [#allocation5], %s169
        // Predicated region
        $region33: #{tpu_custom_call.1} parent=27 // pred_check
          %p171 = pneg %p69
        $region34: #{tpu_custom_call.1} parent=27 // pred_check_branch
          %173 = sbr.rel (%p171) target = $region36
        $region35: #{tpu_custom_call.1} parent=27 // pred_region
          %175 = dma.done %s168, 16
        $region36: #{tpu_custom_call.1} parent=27 // pred_fallthru
          _
        %s176 = sand.u32 %s30, 1
        %s177 = scalar_lea.sflag [#allocation3], %s176
        %s178 = sand.u32 %s30, 1
        %s179 = smul.addr %s178, 8
        %s180 = scalar_lea.vmem [#allocation2], %s179
        %p181 = pneg %p43
        %p182 = pneg %p40
        %s183 = sand.u32 %s56, 1
        %s184 = scalar_lea.sflag [#allocation6], %s183
        %s185 = sand.u32 %s56, 1
        %s186 = scalar_lea.vmem [#allocation5], %s185
        %p187 = pneg %p69
        %p188 = pneg %p66
        %p189 = pneg %p95
        %p190 = pneg %p92
        %s191 = sand.u32 %s82, 1
        %s192 = scalar_lea.sflag [#allocation4], %s191
        %s193 = sand.u32 %s82, 1
        %s194 = smul.addr %s193, 8
        %s195 = scalar_lea.vmem [#allocation7], %s194
        %v196 = vld [vmem:[%s161] sm:$0xff]
        %v197 = vld [vmem:[%s170] sm:$0x1]
        %198 = vmatpush.xpose.msra.mxu0 0.0
        %199 = vmatpush.xpose.msra.mxu0 0.0
        %200 = vmatpush.xpose.msra.mxu0 0.0
        %201 = vmatpush.xpose.msra.mxu0 0.0
        %202 = vmatpush.xpose.msra.mxu0 0.0
        %203 = vmatpush.xpose.msra.mxu0 0.0
        %204 = vmatpush.xpose.msra.mxu0 0.0
        %205 = vmatpush.xpose.msra.mxu0 0.0
        %206 = vmatpush.xpose.msra.mxu0 0.0
        %207 = vmatpush.xpose.msra.mxu0 0.0
        %208 = vmatpush.xpose.msra.mxu0 0.0
        %209 = vmatpush.xpose.msra.mxu0 0.0
        %210 = vmatpush.xpose.msra.mxu0 0.0
        %211 = vmatpush.xpose.msra.mxu0 0.0
        %212 = vmatpush.xpose.msra.mxu0 0.0
        %v213 = vand.u32 %v196, 4294901760
        %214 = vmatpush.xpose.msra.mxu0 %v213
        %v215 = vand.u32 %v196, 4294901760
        %v216 = vsub.f32 %v196, %v215
        %v217 = vand.u32 %v216, 4294901760
        %v218 = vsub.f32 %v216, %v217
        %v219 = vand.u32 %v218, 4294901760
        %220 = vmatmul.f32.gmra.mxu0 %v219
        %v221 = vpop.f32.mrf.mxu0
        %v222 = vadd.f32 0.0, %v221
        %223 = vdwg.mxu0
        %224 = vmatpush.xpose.msra.mxu0 0.0
        %225 = vmatpush.xpose.msra.mxu0 0.0
        %226 = vmatpush.xpose.msra.mxu0 0.0
        %227 = vmatpush.xpose.msra.mxu0 0.0
        %228 = vmatpush.xpose.msra.mxu0 0.0
        %229 = vmatpush.xpose.msra.mxu0 0.0
        %230 = vmatpush.xpose.msra.mxu0 0.0
        %231 = vmatpush.xpose.msra.mxu0 0.0
        %232 = vmatpush.xpose.msra.mxu0 0.0
        %233 = vmatpush.xpose.msra.mxu0 0.0
        %234 = vmatpush.xpose.msra.mxu0 0.0
        %235 = vmatpush.xpose.msra.mxu0 0.0
        %236 = vmatpush.xpose.msra.mxu0 0.0
        %237 = vmatpush.xpose.msra.mxu0 0.0
        %238 = vmatpush.xpose.msra.mxu0 0.0
        %v239 = vand.u32 %v196, 4294901760
        %v240 = vsub.f32 %v196, %v239
        %v241 = vand.u32 %v240, 4294901760
        %v242 = vsub.f32 %v240, %v241
        %v243 = vand.u32 %v242, 4294901760
        %244 = vmatpush.xpose.msra.mxu0 %v243
        %v245 = vand.u32 %v196, 4294901760
        %246 = vmatmul.f32.gmra.mxu0 %v245
        %v247 = vpop.f32.mrf.mxu0
        %v248 = vadd.f32 %v222, %v247
        %249 = vdwg.mxu0
        %250 = vmatpush.xpose.msra.mxu0 0.0
        %251 = vmatpush.xpose.msra.mxu0 0.0
        %252 = vmatpush.xpose.msra.mxu0 0.0
        %253 = vmatpush.xpose.msra.mxu0 0.0
        %254 = vmatpush.xpose.msra.mxu0 0.0
        %255 = vmatpush.xpose.msra.mxu0 0.0
        %256 = vmatpush.xpose.msra.mxu0 0.0
        %257 = vmatpush.xpose.msra.mxu0 0.0
        %258 = vmatpush.xpose.msra.mxu0 0.0
        %259 = vmatpush.xpose.msra.mxu0 0.0
        %260 = vmatpush.xpose.msra.mxu0 0.0
        %261 = vmatpush.xpose.msra.mxu0 0.0
        %262 = vmatpush.xpose.msra.mxu0 0.0
        %263 = vmatpush.xpose.msra.mxu0 0.0
        %264 = vmatpush.xpose.msra.mxu0 0.0
        %v265 = vand.u32 %v196, 4294901760
        %v266 = vsub.f32 %v196, %v265
        %267 = vmatpush.xpose.msra.mxu0 %v266
        %v268 = vand.u32 %v196, 4294901760
        %v269 = vsub.f32 %v196, %v268
        %270 = vmatmul.f32.gmra.mxu0 %v269
        %v271 = vpop.f32.mrf.mxu0
        %v272 = vadd.f32 %v248, %v271
        %273 = vdwg.mxu0
        %274 = vmatpush.xpose.msra.mxu0 0.0
        %275 = vmatpush.xpose.msra.mxu0 0.0
        %276 = vmatpush.xpose.msra.mxu0 0.0
        %277 = vmatpush.xpose.msra.mxu0 0.0
        %278 = vmatpush.xpose.msra.mxu0 0.0
        %279 = vmatpush.xpose.msra.mxu0 0.0
        %280 = vmatpush.xpose.msra.mxu0 0.0
        %281 = vmatpush.xpose.msra.mxu0 0.0
        %282 = vmatpush.xpose.msra.mxu0 0.0
        %283 = vmatpush.xpose.msra.mxu0 0.0
        %284 = vmatpush.xpose.msra.mxu0 0.0
        %285 = vmatpush.xpose.msra.mxu0 0.0
        %286 = vmatpush.xpose.msra.mxu0 0.0
        %287 = vmatpush.xpose.msra.mxu0 0.0
        %288 = vmatpush.xpose.msra.mxu0 0.0
        %v289 = vand.u32 %v196, 4294901760
        %290 = vmatpush.xpose.msra.mxu0 %v289
        %v291 = vand.u32 %v196, 4294901760
        %v292 = vsub.f32 %v196, %v291
        %v293 = vand.u32 %v292, 4294901760
        %294 = vmatmul.f32.gmra.mxu0 %v293
        %v295 = vpop.f32.mrf.mxu0
        %v296 = vadd.f32 %v272, %v295
        %297 = vdwg.mxu0
        %298 = vmatpush.xpose.msra.mxu0 0.0
        %299 = vmatpush.xpose.msra.mxu0 0.0
        %300 = vmatpush.xpose.msra.mxu0 0.0
        %301 = vmatpush.xpose.msra.mxu0 0.0
        %302 = vmatpush.xpose.msra.mxu0 0.0
        %303 = vmatpush.xpose.msra.mxu0 0.0
        %304 = vmatpush.xpose.msra.mxu0 0.0
        %305 = vmatpush.xpose.msra.mxu0 0.0
        %306 = vmatpush.xpose.msra.mxu0 0.0
        %307 = vmatpush.xpose.msra.mxu0 0.0
        %308 = vmatpush.xpose.msra.mxu0 0.0
        %309 = vmatpush.xpose.msra.mxu0 0.0
        %310 = vmatpush.xpose.msra.mxu0 0.0
        %311 = vmatpush.xpose.msra.mxu0 0.0
        %312 = vmatpush.xpose.msra.mxu0 0.0
        %v313 = vand.u32 %v196, 4294901760
        %v314 = vsub.f32 %v196, %v313
        %v315 = vand.u32 %v314, 4294901760
        %316 = vmatpush.xpose.msra.mxu0 %v315
        %v317 = vand.u32 %v196, 4294901760
        %318 = vmatmul.f32.gmra.mxu0 %v317
        %v319 = vpop.f32.mrf.mxu0
        %v320 = vadd.f32 %v296, %v319
        %321 = vdwg.mxu0
        %322 = vmatpush.xpose.msra.mxu0 0.0
        %323 = vmatpush.xpose.msra.mxu0 0.0
        %324 = vmatpush.xpose.msra.mxu0 0.0
        %325 = vmatpush.xpose.msra.mxu0 0.0
        %326 = vmatpush.xpose.msra.mxu0 0.0
        %327 = vmatpush.xpose.msra.mxu0 0.0
        %328 = vmatpush.xpose.msra.mxu0 0.0
        %329 = vmatpush.xpose.msra.mxu0 0.0
        %330 = vmatpush.xpose.msra.mxu0 0.0
        %331 = vmatpush.xpose.msra.mxu0 0.0
        %332 = vmatpush.xpose.msra.mxu0 0.0
        %333 = vmatpush.xpose.msra.mxu0 0.0
        %334 = vmatpush.xpose.msra.mxu0 0.0
        %335 = vmatpush.xpose.msra.mxu0 0.0
        %336 = vmatpush.xpose.msra.mxu0 0.0
        %v337 = vand.u32 %v196, 4294901760
        %338 = vmatpush.xpose.msra.mxu0 %v337
        %v339 = vand.u32 %v196, 4294901760
        %340 = vmatmul.f32.gmra.mxu0 %v339
        %v341 = vpop.f32.mrf.mxu0
        %v342 = vadd.f32 %v320, %v341
        %343 = vdwg.mxu0
        %v344 = vlaneseq
        %v345 = vshrl.u32 %v344, 7
        %v346 = vlaneseq
        %v347 = vand.u32 %v346, 127
        %vm348 = vcmp.eq.s32.totalorder %v345, %v347
        %vm349 = vcmp.eq.s32.totalorder %v197, 0
        %v350 = vsel %vm348, 0.0, %v342
        %v351 = vsel %vm349, 1, 0
        %v352 = vperm.slane %v351, 0
        %vm353 = vcmp.eq.s32.totalorder %v352, 1
        %v354 = vsel %vm353, -inf, %v350
        %vm355 = vcmask 64512
        %v356 = vsel %vm355, %v354, -inf
        %357 = vmax.xlane.f32.xlu0 %v356
        %v358 = vpop.xlane.xlu0 %357
        %v359 = vsub.f32 %v354, %v358
        %v360 = vmul.f32 %v359, 1.442695
        %v361 = vpow.pop %v360
        %v362 = vsel %vm355, %v361, 0.0
        %363 = vadd.xlane.f32.xlu0 %v362
        %v364 = vpop.xlane.xlu0 %363
        %v366 = vsel %vm355, %v361, 0
        %368 = vmatpush.msra.mxu0 0.0
        %369 = vmatpush.msra.mxu0 0.0
        %370 = vmatpush.msra.mxu0 0.0
        %371 = vmatpush.msra.mxu0 0.0
        %372 = vmatpush.msra.mxu0 0.0
        %373 = vmatpush.msra.mxu0 0.0
        %374 = vmatpush.msra.mxu0 0.0
        %375 = vmatpush.msra.mxu0 0.0
        %376 = vmatpush.msra.mxu0 0.0
        %377 = vmatpush.msra.mxu0 0.0
        %378 = vmatpush.msra.mxu0 0.0
        %379 = vmatpush.msra.mxu0 0.0
        %380 = vmatpush.msra.mxu0 0.0
        %381 = vmatpush.msra.mxu0 0.0
        %382 = vmatpush.msra.mxu0 0.0
        %v383 = vand.u32 %v196, 4294901760
        %384 = vmatpush.msra.mxu0 %v383
        %v385 = vand.u32 %v366, 4294901760
        %v386 = vsub.f32 %v366, %v385
        %v387 = vand.u32 %v386, 4294901760
        %v388 = vsub.f32 %v386, %v387
        %v389 = vand.u32 %v388, 4294901760
        %390 = vmatmul.f32.gmra.mxu0 %v389
        %v391 = vpop.f32.mrf.mxu0
        %v392 = vadd.f32 0.0, %v391
        %393 = vdwg.mxu0
        %394 = vmatpush.msra.mxu0 0.0
        %395 = vmatpush.msra.mxu0 0.0
        %396 = vmatpush.msra.mxu0 0.0
        %397 = vmatpush.msra.mxu0 0.0
        %398 = vmatpush.msra.mxu0 0.0
        %399 = vmatpush.msra.mxu0 0.0
        %400 = vmatpush.msra.mxu0 0.0
        %401 = vmatpush.msra.mxu0 0.0
        %402 = vmatpush.msra.mxu0 0.0
        %403 = vmatpush.msra.mxu0 0.0
        %404 = vmatpush.msra.mxu0 0.0
        %405 = vmatpush.msra.mxu0 0.0
        %406 = vmatpush.msra.mxu0 0.0
        %407 = vmatpush.msra.mxu0 0.0
        %408 = vmatpush.msra.mxu0 0.0
        %v409 = vand.u32 %v196, 4294901760
        %v410 = vsub.f32 %v196, %v409
        %v411 = vand.u32 %v410, 4294901760
        %v412 = vsub.f32 %v410, %v411
        %v413 = vand.u32 %v412, 4294901760
        %414 = vmatpush.msra.mxu0 %v413
        %v415 = vand.u32 %v366, 4294901760
        %416 = vmatmul.f32.gmra.mxu0 %v415
        %v417 = vpop.f32.mrf.mxu0
        %v418 = vadd.f32 %v392, %v417
        %419 = vdwg.mxu0
        %420 = vmatpush.msra.mxu0 0.0
        %421 = vmatpush.msra.mxu0 0.0
        %422 = vmatpush.msra.mxu0 0.0
        %423 = vmatpush.msra.mxu0 0.0
        %424 = vmatpush.msra.mxu0 0.0
        %425 = vmatpush.msra.mxu0 0.0
        %426 = vmatpush.msra.mxu0 0.0
        %427 = vmatpush.msra.mxu0 0.0
        %428 = vmatpush.msra.mxu0 0.0
        %429 = vmatpush.msra.mxu0 0.0
        %430 = vmatpush.msra.mxu0 0.0
        %431 = vmatpush.msra.mxu0 0.0
        %432 = vmatpush.msra.mxu0 0.0
        %433 = vmatpush.msra.mxu0 0.0
        %434 = vmatpush.msra.mxu0 0.0
        %v435 = vand.u32 %v196, 4294901760
        %v436 = vsub.f32 %v196, %v435
        %437 = vmatpush.msra.mxu0 %v436
        %v438 = vand.u32 %v366, 4294901760
        %v439 = vsub.f32 %v366, %v438
        %440 = vmatmul.f32.gmra.mxu0 %v439
        %v441 = vpop.f32.mrf.mxu0
        %v442 = vadd.f32 %v418, %v441
        %443 = vdwg.mxu0
        %444 = vmatpush.msra.mxu0 0.0
        %445 = vmatpush.msra.mxu0 0.0
        %446 = vmatpush.msra.mxu0 0.0
        %447 = vmatpush.msra.mxu0 0.0
        %448 = vmatpush.msra.mxu0 0.0
        %449 = vmatpush.msra.mxu0 0.0
        %450 = vmatpush.msra.mxu0 0.0
        %451 = vmatpush.msra.mxu0 0.0
        %452 = vmatpush.msra.mxu0 0.0
        %453 = vmatpush.msra.mxu0 0.0
        %454 = vmatpush.msra.mxu0 0.0
        %455 = vmatpush.msra.mxu0 0.0
        %456 = vmatpush.msra.mxu0 0.0
        %457 = vmatpush.msra.mxu0 0.0
        %458 = vmatpush.msra.mxu0 0.0
        %v459 = vand.u32 %v196, 4294901760
        %460 = vmatpush.msra.mxu0 %v459
        %v461 = vand.u32 %v366, 4294901760
        %v462 = vsub.f32 %v366, %v461
        %v463 = vand.u32 %v462, 4294901760
        %464 = vmatmul.f32.gmra.mxu0 %v463
        %v465 = vpop.f32.mrf.mxu0
        %v466 = vadd.f32 %v442, %v465
        %467 = vdwg.mxu0
        %468 = vmatpush.msra.mxu0 0.0
        %469 = vmatpush.msra.mxu0 0.0
        %470 = vmatpush.msra.mxu0 0.0
        %471 = vmatpush.msra.mxu0 0.0
        %472 = vmatpush.msra.mxu0 0.0
        %473 = vmatpush.msra.mxu0 0.0
        %474 = vmatpush.msra.mxu0 0.0
        %475 = vmatpush.msra.mxu0 0.0
        %476 = vmatpush.msra.mxu0 0.0
        %477 = vmatpush.msra.mxu0 0.0
        %478 = vmatpush.msra.mxu0 0.0
        %479 = vmatpush.msra.mxu0 0.0
        %480 = vmatpush.msra.mxu0 0.0
        %481 = vmatpush.msra.mxu0 0.0
        %482 = vmatpush.msra.mxu0 0.0
        %v483 = vand.u32 %v196, 4294901760
        %v484 = vsub.f32 %v196, %v483
        %v485 = vand.u32 %v484, 4294901760
        %486 = vmatpush.msra.mxu0 %v485
        %v487 = vand.u32 %v366, 4294901760
        %488 = vmatmul.f32.gmra.mxu0 %v487
        %v489 = vpop.f32.mrf.mxu0
        %v490 = vadd.f32 %v466, %v489
        %491 = vdwg.mxu0
        %492 = vmatpush.msra.mxu0 0.0
        %493 = vmatpush.msra.mxu0 0.0
        %494 = vmatpush.msra.mxu0 0.0
        %495 = vmatpush.msra.mxu0 0.0
        %496 = vmatpush.msra.mxu0 0.0
        %497 = vmatpush.msra.mxu0 0.0
        %498 = vmatpush.msra.mxu0 0.0
        %499 = vmatpush.msra.mxu0 0.0
        %500 = vmatpush.msra.mxu0 0.0
        %501 = vmatpush.msra.mxu0 0.0
        %502 = vmatpush.msra.mxu0 0.0
        %503 = vmatpush.msra.mxu0 0.0
        %504 = vmatpush.msra.mxu0 0.0
        %505 = vmatpush.msra.mxu0 0.0
        %506 = vmatpush.msra.mxu0 0.0
        %v507 = vand.u32 %v196, 4294901760
        %508 = vmatpush.msra.mxu0 %v507
        %v509 = vand.u32 %v366, 4294901760
        %510 = vmatmul.f32.gmra.mxu0 %v509
        %v511 = vpop.f32.mrf.mxu0
        %v512 = vadd.f32 %v490, %v511
        %513 = vdwg.mxu0
        %v514 = vrcp.pop %v364
        %v515 = vmul.f32 %v364, %v514
        %v516 = vsub.f32 1.0, %v515
        %v517 = vmul.f32 %v514, %v516
        %v518 = vadd.f32 %v514, %v517
        %vm519 = vweird.f32 %v364
        %vm520 = vweird.f32 %v514
        %vm521 = vmor %vm519, %vm520
        %v522 = vsel %vm521, %v514, %v518
        %v523 = vand.u32 2147483647, %v364
        %vm524 = vcmp.eq.f32.partialorder %v523, 8.507059e+37
        %v525 = vand.u32 %v364, 2147483648
        %v526 = vor.u32 1.1754944e-38, %v525
        %v527 = vsel %vm524, %v526, %v522
        %v528 = vmul.f32 1.0, %v527
        %v529 = vmul.f32 %v512, %v528
        %530 = vst [vmem:[%s195] sm:$0xff] %v529
        %s531 = sand.u32 %s82, 1
        %s532 = scalar_lea.sflag [#allocation4], %s531
        %s533 = sand.u32 %s82, 1
        %s534 = smul.addr %s533, 8
        %s535 = scalar_lea.vmem [#allocation7], %s534
        // Predicated region
        $region37: #{tpu_custom_call.1} parent=27 // pred_check
          %p536 = pneg %p92
        $region38: #{tpu_custom_call.1} parent=27 // pred_check_branch
          %538 = sbr.rel (%p536) target = $region40
        $region39: #{tpu_custom_call.1} parent=27 // pred_region
          %540 = vsyncadd %s532, 0
          %s541 = smul.addr %s22, 8
          %s542 = scalar_lea.hbm %s2, %s541
          %s544 = sshll.u32 %s535, 4
          %s545 = int_to_ptr.vmem [resolvable:$true] %s544
          %s546 = sshll.u32 %s542, 4
          %s547 = int_to_ptr.hbm [resolvable:$true] %s546
          %549 = dma.vmem_to_hbm [thread:$0]  %s545, 128, %s547, %s532
        $region40: #{tpu_custom_call.1} parent=27 // pred_fallthru
          _
      $region28: #{tpu_custom_call.1} parent=5 // pred_fallthru
        _
      %p550 = scmp.le.s32.totalorder 2, %s17
      // Predicated region
      $region41: #{tpu_custom_call.1} parent=5 // pred_check
        %p551 = pneg %p550
      $region42: #{tpu_custom_call.1} parent=5 // pred_check_branch
        %553 = sbr.rel (%p551) target = $region44
      $region43: #{tpu_custom_call.1} parent=5 // pred_region
        %s554 = ssub.s32 %s17, 2
        // Predicated region
        $region45: #{tpu_custom_call.1} parent=43 // pred_check
          %p555 = pneg %p98
        $region46: #{tpu_custom_call.1} parent=43 // pred_check_branch
          %557 = sbr.rel (%p555) target = $region48
        $region47: #{tpu_custom_call.1} parent=43 // pred_region
          %s558 = sand.u32 %s83, 1
          %s559 = scalar_lea.sflag [#allocation4], %s558
          %s560 = sand.u32 %s83, 1
          %s561 = smul.addr %s560, 8
          %s562 = scalar_lea.vmem [#allocation7], %s561
          %564 = dma.done %s559, 128
        $region48: #{tpu_custom_call.1} parent=43 // pred_fallthru
          _
      $region44: #{tpu_custom_call.1} parent=5 // pred_fallthru
        _
    $region6: #{tpu_custom_call.1} parent=1 // loop_footer
      %s21 = sadd.s32 1, %s17
    $region7: #{tpu_custom_call.1} parent=1 // loop_footer_branch
      %16 = sbr.rel target = $region3
    $region8: #{tpu_custom_call.1} parent=1 // loop_exit
      _
    %565 = vsyncpa [#allocation3], 1
    %s566 = scalar_lea.sflag [#allocation3], 1
    %567 = vsyncpa %s566, 1
    %568 = vsyncpa [#allocation6], 1
    %s569 = scalar_lea.sflag [#allocation6], 1
    %570 = vsyncpa %s569, 1
    %571 = vsyncpa [#allocation4], 1
    %s572 = scalar_lea.sflag [#allocation4], 1
    %573 = vsyncpa %s572, 1

</llo_original>
